<compile_context>
chip_gen: v7x
topology: tpu7x:2x2x1
jax: 0.10.0
libtpu: 0.0.40
codegen_flags: <defaults>
</compile_context>

<pallas_src>
import functools

import jax
import jax.numpy as jnp
from jax.experimental import pallas as pl
from jax.experimental.pallas import tpu as pltpu

BN_EPS = 1e-5
LANE = 128


def _pad_to(n, m):
    return ((n + m - 1) // m) * m


# ----------------------------------------------------------------------------
# Fused whole-network kernel.
#   x_ref  : [B, Fin_p]        bf16
#   w0_ref : [Fin_p, W_p]      bf16     (block 0 weight; bias cancels under BN)
#   g0/b0  : [1, W_p]          f32      (BN gamma / beta of block 0)
#   wh_ref : [L, W_p, W_p]     bf16     (stacked hidden-block weights)
#   gh/bh  : [L, 1, W_p]       f32
#   wf_ref : [W_p, Fout_p]     bf16     (final Linear weight)
#   bf_ref : [1, Fout_p]       f32      (final Linear bias; kept, no BN after)
#   o_ref  : [B, Fout_p]       f32
# ----------------------------------------------------------------------------
def _fused_fc_kernel(x_ref, w0_ref, g0_ref, b0_ref,
                     wh_ref, gh_ref, bh_ref,
                     wf_ref, bf_ref, o_ref, *, n_hidden, log):
    def bn_relu(z, gamma, beta):
        # One reduction sweep: mean and E[z^2]; folded scale/shift; f32 math.
        inv_b = 1.0 / z.shape[0]
        mean = jnp.sum(z, axis=0, keepdims=True) * inv_b
        mean_sq = jnp.sum(z * z, axis=0, keepdims=True) * inv_b
        var = jnp.maximum(mean_sq - mean * mean, 0.0)      # biased var (torch train mode)
        scale = gamma * jax.lax.rsqrt(var + BN_EPS)        # EUP
        shift = beta - mean * scale
        return jnp.maximum(z * scale + shift, 0.0)         # ReLU

    # Block 0: Linear -> BN -> ReLU (bias omitted: exact no-op under batch-stat BN).
    z = jnp.dot(x_ref[...], w0_ref[...], preferred_element_type=jnp.float32)
    h = bn_relu(z, g0_ref[...], b0_ref[...])

    # Hidden blocks, unrolled; weights statically indexed from the stacked VMEM ref.
    for l in range(n_hidden):
        z = jnp.dot(h.astype(jnp.bfloat16), wh_ref[l],
                    preferred_element_type=jnp.float32)
        h = bn_relu(z, gh_ref[l], bh_ref[l])

    # Final Linear.
    y = jnp.dot(h.astype(jnp.bfloat16), wf_ref[...],
                preferred_element_type=jnp.float32) + bf_ref[...]
    if log:
        y = jnp.exp(y)
    o_ref[...] = y


# ----------------------------------------------------------------------------
# Parameters: logical (unpadded) f32 params mirroring torch defaults, then a
# one-time "prepare" step that pads to lane multiples, casts weights to bf16
# and stacks the hidden blocks.
# ----------------------------------------------------------------------------
def init_params(key, input_features, output_features, layers, width):
    # Block linear biases are intentionally not created: with BatchNorm (batch
    # statistics) right after, they cancel exactly.
    blocks = []
    dims = [(input_features, width)] + [(width, width)] * layers
    for fin, fout in dims:
        key, kw = jax.random.split(key)
        bound = float(fin) ** -0.5
        w = jax.random.uniform(kw, (fin, fout), jnp.float32, -bound, bound)
        gamma = jnp.ones((fout,), jnp.float32)
        beta = jnp.zeros((fout,), jnp.float32)
        blocks.append((w, gamma, beta))
    key, kw, kb = jax.random.split(key, 3)
    bound = float(width) ** -0.5
    wf = jax.random.uniform(kw, (width, output_features), jnp.float32, -bound, bound)
    bf = jax.random.uniform(kb, (output_features,), jnp.float32, -bound, bound)
    return {"blocks": blocks, "final": (wf, bf)}


def prepare_params(params):
    blocks = params["blocks"]
    (w0, g0, b0), hidden = blocks[0], list(blocks[1:])
    fin, width = w0.shape
    fin_p, w_p = _pad_to(fin, LANE), _pad_to(width, LANE)

    def pad_w(w, rows, cols):
        return jnp.pad(w, ((0, rows - w.shape[0]), (0, cols - w.shape[1]))
                       ).astype(jnp.bfloat16)

    def pad_v(v, cols, fill):
        return jnp.pad(v, (0, cols - v.shape[0]), constant_values=fill
                       ).reshape(1, cols).astype(jnp.float32)

    w0p = pad_w(w0, fin_p, w_p)
    g0p = pad_v(g0, w_p, 1.0)
    b0p = pad_v(b0, w_p, 0.0)

    n_hidden = len(hidden)
    if n_hidden:
        whp = jnp.stack([pad_w(w, w_p, w_p) for (w, _, _) in hidden])
        ghp = jnp.stack([pad_v(g, w_p, 1.0) for (_, g, _) in hidden])
        bhp = jnp.stack([pad_v(b, w_p, 0.0) for (_, _, b) in hidden])
    else:  # dummy (never read when n_hidden == 0)
        whp = jnp.zeros((1, w_p, w_p), jnp.bfloat16)
        ghp = jnp.ones((1, 1, w_p), jnp.float32)
        bhp = jnp.zeros((1, 1, w_p), jnp.float32)

    wf, bf = params["final"]
    fout = wf.shape[1]
    fout_p = _pad_to(fout, LANE)
    wfp = pad_w(wf, w_p, fout_p)
    bfp = pad_v(bf, fout_p, 0.0)

    return {"w0": w0p, "g0": g0p, "b0": b0p, "wh": whp, "gh": ghp, "bh": bhp,
            "wf": wfp, "bf": bfp, "fin": fin, "fout": fout, "n_hidden": n_hidden}


# ----------------------------------------------------------------------------
# Forward: one pallas_call for the whole network.
# ----------------------------------------------------------------------------
def fully_connected_forward(prep, x, *, log=False):
    B, fin = x.shape
    assert fin == prep["fin"]
    assert B % 8 == 0, "batch must be a multiple of 8 (sublane constraint)"
    fin_p = prep["w0"].shape[0]
    w_p = prep["w0"].shape[1]
    fout_p = prep["wf"].shape[1]

    xp = jnp.pad(x, ((0, 0), (0, fin_p - fin))).astype(jnp.bfloat16)
    args = (xp, prep["w0"], prep["g0"], prep["b0"],
            prep["wh"], prep["gh"], prep["bh"], prep["wf"], prep["bf"])

    # Whole-network-resident design: budget VMEM explicitly (v7x-safe cap).
    in_bytes = sum(int(a.size) * a.dtype.itemsize for a in args)
    out_bytes = B * fout_p * 4
    act_bytes = 4 * B * w_p * 4  # f32 z / h working-set slack
    vmem_limit = int(min(max(2 * (in_bytes + out_bytes) + act_bytes, 16 << 20),
                         60 << 20))

    kernel = functools.partial(_fused_fc_kernel,
                               n_hidden=prep["n_hidden"], log=log)
    vmem = pltpu.MemorySpace.VMEM
    out = pl.pallas_call(
        kernel,
        out_shape=jax.ShapeDtypeStruct((B, fout_p), jnp.float32),
        in_specs=[pl.BlockSpec(memory_space=vmem)] * len(args),
        out_specs=pl.BlockSpec(memory_space=vmem),
        compiler_params=pltpu.CompilerParams(vmem_limit_bytes=vmem_limit),
    )(*args)
    return out[:, :prep["fout"]]


# ----------------------------------------------------------------------------
# Pure-JAX references.
# ----------------------------------------------------------------------------
def reference_f32(params, x, *, log=False):
    """Module semantics at full f32 matmul precision."""
    y = x
    for (w, g, b) in params["blocks"]:
        z = jnp.dot(y, w, precision=jax.lax.Precision.HIGHEST)
        mean = z.mean(0, keepdims=True)
        var = ((z - mean) ** 2).mean(0, keepdims=True)
        y = jnp.maximum((z - mean) / jnp.sqrt(var + BN_EPS) * g + b, 0.0)
    wf, bf = params["final"]
    y = jnp.dot(y, wf, precision=jax.lax.Precision.HIGHEST) + bf
    return jnp.exp(y) if log else y


def reference_bf16(params, x, *, log=False):
    """Same math, mirroring the kernel's bf16 matmul inputs / f32 accumulation."""
    y = x
    for (w, g, b) in params["blocks"]:
        z = jnp.dot(y.astype(jnp.bfloat16), w.astype(jnp.bfloat16),
                    preferred_element_type=jnp.float32)
        mean = z.mean(0, keepdims=True)
        var = ((z - mean) ** 2).mean(0, keepdims=True)
        y = jnp.maximum((z - mean) / jnp.sqrt(var + BN_EPS) * g + b, 0.0)
    wf, bf = params["final"]
    y = jnp.dot(y.astype(jnp.bfloat16), wf.astype(jnp.bfloat16),
                preferred_element_type=jnp.float32) + bf
    return jnp.exp(y) if log else y


if __name__ == "__main__":
    key = jax.random.PRNGKey(0)
    kx, kp = jax.random.split(key)

    B, F_IN, F_OUT, LAYERS, WIDTH = 16, 8, 4, 2, 32
    x = jax.random.normal(kx, (B, F_IN), jnp.float32)
    params = init_params(kp, F_IN, F_OUT, LAYERS, WIDTH)
    prep = prepare_params(params)

    out = fully_connected_forward(prep, x, log=False)
    out = jax.block_until_ready(out)
    assert out.shape == (B, F_OUT)

    ref_match = reference_bf16(params, x)          # same precision choices as kernel
    ref_exact = reference_f32(params, x)           # exact f32 module semantics
    assert jnp.allclose(out, ref_match, atol=2e-3, rtol=2e-3), \
        "mismatch vs bf16-matched reference"
    assert jnp.allclose(out, ref_exact, atol=5e-2, rtol=5e-2), \
        "mismatch vs f32 reference"
    print("KERNEL_OK")
</pallas_src>

<mosaic_0001>
module attributes {stable_mosaic.version = 11 : i64} {
  func.func @_fused_fc_kernel(%arg0: memref<16x128xbf16, #tpu.memory_space<vmem>>, %arg1: memref<128x128xbf16, #tpu.memory_space<vmem>>, %arg2: memref<1x128xf32, #tpu.memory_space<vmem>>, %arg3: memref<1x128xf32, #tpu.memory_space<vmem>>, %arg4: memref<2x128x128xbf16, #tpu.memory_space<vmem>>, %arg5: memref<2x1x128xf32, #tpu.memory_space<vmem>>, %arg6: memref<2x1x128xf32, #tpu.memory_space<vmem>>, %arg7: memref<128x128xbf16, #tpu.memory_space<vmem>>, %arg8: memref<1x128xf32, #tpu.memory_space<vmem>>, %arg9: memref<16x128xf32, #tpu.memory_space<vmem>>) attributes {dimension_semantics = [], scalar_prefetch = 0 : i64, scratch_operands = 0 : i64, tpu.core_type = #tpu.core_type<tc>} {
    %c0 = arith.constant 0 : index
    %c0_0 = arith.constant 0 : index
    %0 = vector.load %arg0[%c0, %c0_0] : memref<16x128xbf16, #tpu.memory_space<vmem>>, vector<16x128xbf16>
    %c0_1 = arith.constant 0 : index
    %c0_2 = arith.constant 0 : index
    %1 = vector.load %arg1[%c0_1, %c0_2] : memref<128x128xbf16, #tpu.memory_space<vmem>>, vector<128x128xbf16>
    %cst = arith.constant dense<0.000000e+00> : vector<16x128xf32>
    %2 = tpu.matmul %0, %1, %cst {dimension_numbers = #tpu.dot_dimension_numbers<[1], [0], [0], [1], [0, 0, 1, 1], [], []>} : vector<16x128xbf16>, vector<128x128xbf16>, vector<16x128xf32> -> vector<16x128xf32>
    %c0_3 = arith.constant 0 : index
    %c0_4 = arith.constant 0 : index
    %3 = vector.load %arg2[%c0_3, %c0_4] : memref<1x128xf32, #tpu.memory_space<vmem>>, vector<1x128xf32>
    %c0_5 = arith.constant 0 : index
    %c0_6 = arith.constant 0 : index
    %4 = vector.load %arg3[%c0_5, %c0_6] : memref<1x128xf32, #tpu.memory_space<vmem>>, vector<1x128xf32>
    %cst_7 = arith.constant dense<0.000000e+00> : vector<128xf32>
    %5 = vector.multi_reduction <add>, %2, %cst_7 [0] : vector<16x128xf32> to vector<128xf32>
    %6 = vector.shape_cast %5 : vector<128xf32> to vector<1x128xf32>
    %cst_8 = arith.constant 6.250000e-02 : f32
    %7 = vector.broadcast %cst_8 : f32 to vector<1x128xf32>
    %8 = arith.mulf %6, %7 : vector<1x128xf32>
    %9 = arith.mulf %2, %2 : vector<16x128xf32>
    %cst_9 = arith.constant dense<0.000000e+00> : vector<128xf32>
    %10 = vector.multi_reduction <add>, %9, %cst_9 [0] : vector<16x128xf32> to vector<128xf32>
    %11 = vector.shape_cast %10 : vector<128xf32> to vector<1x128xf32>
    %cst_10 = arith.constant 6.250000e-02 : f32
    %12 = vector.broadcast %cst_10 : f32 to vector<1x128xf32>
    %13 = arith.mulf %11, %12 : vector<1x128xf32>
    %14 = arith.mulf %8, %8 : vector<1x128xf32>
    %15 = arith.subf %13, %14 : vector<1x128xf32>
    %cst_11 = arith.constant 0.000000e+00 : f32
    %16 = vector.broadcast %cst_11 : f32 to vector<1x128xf32>
    %17 = arith.maximumf %15, %16 : vector<1x128xf32>
    %cst_12 = arith.constant 9.99999974E-6 : f32
    %18 = vector.broadcast %cst_12 : f32 to vector<1x128xf32>
    %19 = arith.addf %17, %18 : vector<1x128xf32>
    %20 = math.rsqrt %19 : vector<1x128xf32>
    %21 = arith.mulf %3, %20 : vector<1x128xf32>
    %22 = arith.mulf %8, %21 : vector<1x128xf32>
    %23 = arith.subf %4, %22 : vector<1x128xf32>
    %24 = vector.broadcast %21 : vector<1x128xf32> to vector<16x128xf32>
    %25 = arith.mulf %2, %24 : vector<16x128xf32>
    %26 = vector.broadcast %23 : vector<1x128xf32> to vector<16x128xf32>
    %27 = arith.addf %25, %26 : vector<16x128xf32>
    %cst_13 = arith.constant 0.000000e+00 : f32
    %28 = vector.broadcast %cst_13 : f32 to vector<16x128xf32>
    %29 = arith.maximumf %27, %28 : vector<16x128xf32>
    %30 = arith.truncf %29 : vector<16x128xf32> to vector<16x128xbf16>
    %c0_14 = arith.constant 0 : index
    %c0_15 = arith.constant 0 : index
    %c0_16 = arith.constant 0 : index
    %31 = vector.load %arg4[%c0_14, %c0_15, %c0_16] : memref<2x128x128xbf16, #tpu.memory_space<vmem>>, vector<1x128x128xbf16>
    %32 = vector.shape_cast %31 : vector<1x128x128xbf16> to vector<128x128xbf16>
    %cst_17 = arith.constant dense<0.000000e+00> : vector<16x128xf32>
    %33 = tpu.matmul %30, %32, %cst_17 {dimension_numbers = #tpu.dot_dimension_numbers<[1], [0], [0], [1], [0, 0, 1, 1], [], []>} : vector<16x128xbf16>, vector<128x128xbf16>, vector<16x128xf32> -> vector<16x128xf32>
    %c0_18 = arith.constant 0 : index
    %c0_19 = arith.constant 0 : index
    %c0_20 = arith.constant 0 : index
    %34 = vector.load %arg5[%c0_18, %c0_19, %c0_20] : memref<2x1x128xf32, #tpu.memory_space<vmem>>, vector<1x1x128xf32>
    %35 = vector.shape_cast %34 : vector<1x1x128xf32> to vector<1x128xf32>
    %c0_21 = arith.constant 0 : index
    %c0_22 = arith.constant 0 : index
    %c0_23 = arith.constant 0 : index
    %36 = vector.load %arg6[%c0_21, %c0_22, %c0_23] : memref<2x1x128xf32, #tpu.memory_space<vmem>>, vector<1x1x128xf32>
    %37 = vector.shape_cast %36 : vector<1x1x128xf32> to vector<1x128xf32>
    %cst_24 = arith.constant dense<0.000000e+00> : vector<128xf32>
    %38 = vector.multi_reduction <add>, %33, %cst_24 [0] : vector<16x128xf32> to vector<128xf32>
    %39 = vector.shape_cast %38 : vector<128xf32> to vector<1x128xf32>
    %cst_25 = arith.constant 6.250000e-02 : f32
    %40 = vector.broadcast %cst_25 : f32 to vector<1x128xf32>
    %41 = arith.mulf %39, %40 : vector<1x128xf32>
    %42 = arith.mulf %33, %33 : vector<16x128xf32>
    %cst_26 = arith.constant dense<0.000000e+00> : vector<128xf32>
    %43 = vector.multi_reduction <add>, %42, %cst_26 [0] : vector<16x128xf32> to vector<128xf32>
    %44 = vector.shape_cast %43 : vector<128xf32> to vector<1x128xf32>
    %cst_27 = arith.constant 6.250000e-02 : f32
    %45 = vector.broadcast %cst_27 : f32 to vector<1x128xf32>
    %46 = arith.mulf %44, %45 : vector<1x128xf32>
    %47 = arith.mulf %41, %41 : vector<1x128xf32>
    %48 = arith.subf %46, %47 : vector<1x128xf32>
    %cst_28 = arith.constant 0.000000e+00 : f32
    %49 = vector.broadcast %cst_28 : f32 to vector<1x128xf32>
    %50 = arith.maximumf %48, %49 : vector<1x128xf32>
    %cst_29 = arith.constant 9.99999974E-6 : f32
    %51 = vector.broadcast %cst_29 : f32 to vector<1x128xf32>
    %52 = arith.addf %50, %51 : vector<1x128xf32>
    %53 = math.rsqrt %52 : vector<1x128xf32>
    %54 = arith.mulf %35, %53 : vector<1x128xf32>
    %55 = arith.mulf %41, %54 : vector<1x128xf32>
    %56 = arith.subf %37, %55 : vector<1x128xf32>
    %57 = vector.broadcast %54 : vector<1x128xf32> to vector<16x128xf32>
    %58 = arith.mulf %33, %57 : vector<16x128xf32>
    %59 = vector.broadcast %56 : vector<1x128xf32> to vector<16x128xf32>
    %60 = arith.addf %58, %59 : vector<16x128xf32>
    %cst_30 = arith.constant 0.000000e+00 : f32
    %61 = vector.broadcast %cst_30 : f32 to vector<16x128xf32>
    %62 = arith.maximumf %60, %61 : vector<16x128xf32>
    %63 = arith.truncf %62 : vector<16x128xf32> to vector<16x128xbf16>
    %c1 = arith.constant 1 : index
    %c0_31 = arith.constant 0 : index
    %c0_32 = arith.constant 0 : index
    %64 = vector.load %arg4[%c1, %c0_31, %c0_32] : memref<2x128x128xbf16, #tpu.memory_space<vmem>>, vector<1x128x128xbf16>
    %65 = vector.shape_cast %64 : vector<1x128x128xbf16> to vector<128x128xbf16>
    %cst_33 = arith.constant dense<0.000000e+00> : vector<16x128xf32>
    %66 = tpu.matmul %63, %65, %cst_33 {dimension_numbers = #tpu.dot_dimension_numbers<[1], [0], [0], [1], [0, 0, 1, 1], [], []>} : vector<16x128xbf16>, vector<128x128xbf16>, vector<16x128xf32> -> vector<16x128xf32>
    %c1_34 = arith.constant 1 : index
    %c0_35 = arith.constant 0 : index
    %c0_36 = arith.constant 0 : index
    %67 = vector.load %arg5[%c1_34, %c0_35, %c0_36] : memref<2x1x128xf32, #tpu.memory_space<vmem>>, vector<1x1x128xf32>
    %68 = vector.shape_cast %67 : vector<1x1x128xf32> to vector<1x128xf32>
    %c1_37 = arith.constant 1 : index
    %c0_38 = arith.constant 0 : index
    %c0_39 = arith.constant 0 : index
    %69 = vector.load %arg6[%c1_37, %c0_38, %c0_39] : memref<2x1x128xf32, #tpu.memory_space<vmem>>, vector<1x1x128xf32>
    %70 = vector.shape_cast %69 : vector<1x1x128xf32> to vector<1x128xf32>
    %cst_40 = arith.constant dense<0.000000e+00> : vector<128xf32>
    %71 = vector.multi_reduction <add>, %66, %cst_40 [0] : vector<16x128xf32> to vector<128xf32>
    %72 = vector.shape_cast %71 : vector<128xf32> to vector<1x128xf32>
    %cst_41 = arith.constant 6.250000e-02 : f32
    %73 = vector.broadcast %cst_41 : f32 to vector<1x128xf32>
    %74 = arith.mulf %72, %73 : vector<1x128xf32>
    %75 = arith.mulf %66, %66 : vector<16x128xf32>
    %cst_42 = arith.constant dense<0.000000e+00> : vector<128xf32>
    %76 = vector.multi_reduction <add>, %75, %cst_42 [0] : vector<16x128xf32> to vector<128xf32>
    %77 = vector.shape_cast %76 : vector<128xf32> to vector<1x128xf32>
    %cst_43 = arith.constant 6.250000e-02 : f32
    %78 = vector.broadcast %cst_43 : f32 to vector<1x128xf32>
    %79 = arith.mulf %77, %78 : vector<1x128xf32>
    %80 = arith.mulf %74, %74 : vector<1x128xf32>
    %81 = arith.subf %79, %80 : vector<1x128xf32>
    %cst_44 = arith.constant 0.000000e+00 : f32
    %82 = vector.broadcast %cst_44 : f32 to vector<1x128xf32>
    %83 = arith.maximumf %81, %82 : vector<1x128xf32>
    %cst_45 = arith.constant 9.99999974E-6 : f32
    %84 = vector.broadcast %cst_45 : f32 to vector<1x128xf32>
    %85 = arith.addf %83, %84 : vector<1x128xf32>
    %86 = math.rsqrt %85 : vector<1x128xf32>
    %87 = arith.mulf %68, %86 : vector<1x128xf32>
    %88 = arith.mulf %74, %87 : vector<1x128xf32>
    %89 = arith.subf %70, %88 : vector<1x128xf32>
    %90 = vector.broadcast %87 : vector<1x128xf32> to vector<16x128xf32>
    %91 = arith.mulf %66, %90 : vector<16x128xf32>
    %92 = vector.broadcast %89 : vector<1x128xf32> to vector<16x128xf32>
    %93 = arith.addf %91, %92 : vector<16x128xf32>
    %cst_46 = arith.constant 0.000000e+00 : f32
    %94 = vector.broadcast %cst_46 : f32 to vector<16x128xf32>
    %95 = arith.maximumf %93, %94 : vector<16x128xf32>
    %96 = arith.truncf %95 : vector<16x128xf32> to vector<16x128xbf16>
    %c0_47 = arith.constant 0 : index
    %c0_48 = arith.constant 0 : index
    %97 = vector.load %arg7[%c0_47, %c0_48] : memref<128x128xbf16, #tpu.memory_space<vmem>>, vector<128x128xbf16>
    %cst_49 = arith.constant dense<0.000000e+00> : vector<16x128xf32>
    %98 = tpu.matmul %96, %97, %cst_49 {dimension_numbers = #tpu.dot_dimension_numbers<[1], [0], [0], [1], [0, 0, 1, 1], [], []>} : vector<16x128xbf16>, vector<128x128xbf16>, vector<16x128xf32> -> vector<16x128xf32>
    %c0_50 = arith.constant 0 : index
    %c0_51 = arith.constant 0 : index
    %99 = vector.load %arg8[%c0_50, %c0_51] : memref<1x128xf32, #tpu.memory_space<vmem>>, vector<1x128xf32>
    %100 = vector.broadcast %99 : vector<1x128xf32> to vector<16x128xf32>
    %101 = arith.addf %98, %100 : vector<16x128xf32>
    %c0_52 = arith.constant 0 : index
    %c0_53 = arith.constant 0 : index
    %102 = vector.load %arg9[%c0_52, %c0_53] : memref<16x128xf32, #tpu.memory_space<vmem>>, vector<16x128xf32>
    tpu.vector_store %arg9[%c0_52, %c0_53], %101 {strides = array<i32>} : memref<16x128xf32, #tpu.memory_space<vmem>>, vector<16x128xf32>,
    return
  }
}

</mosaic_0001>

<llo_original>
// kernel: tpu_custom_call.1
$region0: #{tpu_custom_call.1}
  #allocation0 [shape = 'u32[]', space=smem, size = 0x4, offset = 0x4, fixed_abs, tag = 'smem constant byte address 0x4 - core index']
  #allocation1 [shape = 'u32[144,128]{1,0:T(1,128)}', space=vmem, size = 0x12000, scoped, tag = 'internal scratch']
  %s0 = inlined_call_operand.hbm [shape: bf16[16,128], index: 0, kind: input, shape index: {}]
  %s1 = inlined_call_operand.hbm [shape: bf16[128,128], index: 1, kind: input, shape index: {}]
  %s2 = inlined_call_operand.vmem [shape: f32[1,128], index: 2, kind: input, shape index: {}]
  %s3 = inlined_call_operand.vmem [shape: f32[1,128], index: 3, kind: input, shape index: {}]
  %s4 = inlined_call_operand.hbm [shape: bf16[2,128,128], index: 4, kind: input, shape index: {}]
  %s5 = inlined_call_operand.vmem [shape: f32[2,1,128], index: 5, kind: input, shape index: {}]
  %s6 = inlined_call_operand.vmem [shape: f32[2,1,128], index: 6, kind: input, shape index: {}]
  %s7 = inlined_call_operand.hbm [shape: bf16[128,128], index: 7, kind: input, shape index: {}]
  %s8 = inlined_call_operand.vmem [shape: f32[1,128], index: 8, kind: input, shape index: {}]
  %s9 = inlined_call_operand.hbm [shape: f32[16,128], index: 9, kind: output, shape index: {}]
  %s10 = sld [smem:[#allocation0]]
  $region62: #{tpu_custom_call.1} parent=0
    _
  %s12 = ssub.s32 1, %s10
  %s13 = scalar_select 0, %s12, %s10
  $region1: #{tpu_custom_call.1} parent=0
    #allocation2 [shape = 'u8[4096]{0}', space=vmem, size = 0x1000, scoped, tag = 'input window, operand 0, single buffered']
    #allocation3 [shape = 's32[1]{0}', space=sflag, size = 0x4, scoped, tag = 'scoped memory for tpu_custom_call.1']
    #allocation4 [shape = 's32[1]{0}', space=sflag, size = 0x4, scoped, tag = 'scoped memory for tpu_custom_call.1']
    #allocation5 [shape = 'u8[32768]{0}', space=vmem, size = 0x8000, scoped, tag = 'input window, operand 1, single buffered']
    #allocation6 [shape = 's32[1]{0}', space=sflag, size = 0x4, scoped, tag = 'scoped memory for tpu_custom_call.1']
    #allocation7 [shape = 'u8[65536]{0}', space=vmem, size = 0x10000, scoped, tag = 'input window, operand 4, single buffered']
    #allocation8 [shape = 'u8[32768]{0}', space=vmem, size = 0x8000, scoped, tag = 'input window, operand 7, single buffered']
    #allocation9 [shape = 's32[1]{0}', space=sflag, size = 0x4, scoped, tag = 'scoped memory for tpu_custom_call.1']
    #allocation10 [shape = 'u8[8192]{0}', space=vmem, size = 0x2000, scoped, tag = 'output window, operand 0, single buffered']
    %14 = vsyncpa [#allocation3], 0
    %15 = vsyncpa [#allocation6], 0
    %16 = vsyncpa [#allocation9], 0
    %17 = vsyncpa [#allocation4], 0
    // Predicated region
    $region2: #{tpu_custom_call.1} parent=1 // pred_check
      _
    $region3: #{tpu_custom_call.1} parent=1 // pred_check_branch
      %19 = sbr.rel (0) target = $region5
    $region4: #{tpu_custom_call.1} parent=1 // pred_region
      %s21 = ssub.s32 128, 128
      %22 = vsyncadd [#allocation3], %s21
      %s23 = sshll.u32 [#allocation2], 4
      %s24 = int_to_ptr.vmem [resolvable:$true] %s23
      %29 = dma.hbm_to_vmem [thread:$0]  %s0, 128, %s24, [#allocation3], 64, 64, 4
    $region5: #{tpu_custom_call.1} parent=1 // pred_fallthru
      _
    // Predicated region
    $region6: #{tpu_custom_call.1} parent=1 // pred_check
      _
    $region7: #{tpu_custom_call.1} parent=1 // pred_check_branch
      %31 = sbr.rel (0) target = $region9
    $region8: #{tpu_custom_call.1} parent=1 // pred_region
      %s33 = ssub.s32 1024, 1024
      %34 = vsyncadd [#allocation6], %s33
      %s35 = sshll.u32 [#allocation5], 4
      %s36 = int_to_ptr.vmem [resolvable:$true] %s35
      %41 = dma.hbm_to_vmem [thread:$0]  %s1, 1024, %s36, [#allocation6], 64, 64, 4
    $region9: #{tpu_custom_call.1} parent=1 // pred_fallthru
      _
    // Predicated region
    $region10: #{tpu_custom_call.1} parent=1 // pred_check
      _
    $region11: #{tpu_custom_call.1} parent=1 // pred_check_branch
      %43 = sbr.rel (0) target = $region13
    $region12: #{tpu_custom_call.1} parent=1 // pred_region
      _
    $region13: #{tpu_custom_call.1} parent=1 // pred_fallthru
      _
    // Predicated region
    $region14: #{tpu_custom_call.1} parent=1 // pred_check
      _
    $region15: #{tpu_custom_call.1} parent=1 // pred_check_branch
      %45 = sbr.rel (0) target = $region17
    $region16: #{tpu_custom_call.1} parent=1 // pred_region
      _
    $region17: #{tpu_custom_call.1} parent=1 // pred_fallthru
      _
    // Predicated region
    $region18: #{tpu_custom_call.1} parent=1 // pred_check
      _
    $region19: #{tpu_custom_call.1} parent=1 // pred_check_branch
      %47 = sbr.rel (0) target = $region21
    $region20: #{tpu_custom_call.1} parent=1 // pred_region
      %s49 = ssub.s32 2048, 2048
      %50 = vsyncadd [#allocation6], %s49
      %s51 = sshll.u32 [#allocation7], 4
      %s52 = int_to_ptr.vmem [resolvable:$true] %s51
      %57 = dma.hbm_to_vmem [thread:$0]  %s4, 2048, %s52, [#allocation6], 64, 64, 4
    $region21: #{tpu_custom_call.1} parent=1 // pred_fallthru
      _
    // Predicated region
    $region22: #{tpu_custom_call.1} parent=1 // pred_check
      _
    $region23: #{tpu_custom_call.1} parent=1 // pred_check_branch
      %59 = sbr.rel (0) target = $region25
    $region24: #{tpu_custom_call.1} parent=1 // pred_region
      _
    $region25: #{tpu_custom_call.1} parent=1 // pred_fallthru
      _
    // Predicated region
    $region26: #{tpu_custom_call.1} parent=1 // pred_check
      _
    $region27: #{tpu_custom_call.1} parent=1 // pred_check_branch
      %61 = sbr.rel (0) target = $region29
    $region28: #{tpu_custom_call.1} parent=1 // pred_region
      _
    $region29: #{tpu_custom_call.1} parent=1 // pred_fallthru
      _
    // Predicated region
    $region30: #{tpu_custom_call.1} parent=1 // pred_check
      _
    $region31: #{tpu_custom_call.1} parent=1 // pred_check_branch
      %63 = sbr.rel (0) target = $region33
    $region32: #{tpu_custom_call.1} parent=1 // pred_region
      %s65 = ssub.s32 1024, 1024
      %66 = vsyncadd [#allocation9], %s65
      %s67 = sshll.u32 [#allocation8], 4
      %s68 = int_to_ptr.vmem [resolvable:$true] %s67
      %73 = dma.hbm_to_vmem [thread:$0]  %s7, 1024, %s68, [#allocation9], 64, 64, 4
    $region33: #{tpu_custom_call.1} parent=1 // pred_fallthru
      _
    // Predicated region
    $region34: #{tpu_custom_call.1} parent=1 // pred_check
      _
    $region35: #{tpu_custom_call.1} parent=1 // pred_check_branch
      %75 = sbr.rel (0) target = $region37
    $region36: #{tpu_custom_call.1} parent=1 // pred_region
      _
    $region37: #{tpu_custom_call.1} parent=1 // pred_fallthru
      _
    // Predicated region
    $region38: #{tpu_custom_call.1} parent=1 // pred_check
      _
    $region39: #{tpu_custom_call.1} parent=1 // pred_check_branch
      %77 = sbr.rel (0) target = $region41
    $region40: #{tpu_custom_call.1} parent=1 // pred_region
      %78 = dma.done [#allocation3], 128
    $region41: #{tpu_custom_call.1} parent=1 // pred_fallthru
      _
    // Predicated region
    $region42: #{tpu_custom_call.1} parent=1 // pred_check
      _
    $region43: #{tpu_custom_call.1} parent=1 // pred_check_branch
      %80 = sbr.rel (0) target = $region45
    $region44: #{tpu_custom_call.1} parent=1 // pred_region
      %81 = dma.done [#allocation6], 1024
    $region45: #{tpu_custom_call.1} parent=1 // pred_fallthru
      _
    // Predicated region
    $region46: #{tpu_custom_call.1} parent=1 // pred_check
      _
    $region47: #{tpu_custom_call.1} parent=1 // pred_check_branch
      %83 = sbr.rel (0) target = $region49
    $region48: #{tpu_custom_call.1} parent=1 // pred_region
      %84 = dma.done [#allocation6], 2048
    $region49: #{tpu_custom_call.1} parent=1 // pred_fallthru
      _
    // Predicated region
    $region50: #{tpu_custom_call.1} parent=1 // pred_check
      _
    $region51: #{tpu_custom_call.1} parent=1 // pred_check_branch
      %86 = sbr.rel (0) target = $region53
    $region52: #{tpu_custom_call.1} parent=1 // pred_region
      %87 = dma.done [#allocation9], 1024
    $region53: #{tpu_custom_call.1} parent=1 // pred_fallthru
      _
    %v89 = vld [vmem:[#allocation2] sm:$0xf]
    %v90 = vld [vmem:[#allocation2 + $0x4] sm:$0xf]
    %v91 = vld [vmem:[#allocation5] sm:$0xf]
    %v92 = vld [vmem:[#allocation5 + $0x4] sm:$0xf]
    %v93 = vld [vmem:[#allocation5 + $0x8] sm:$0xf]
    %v94 = vld [vmem:[#allocation5 + $0xc] sm:$0xf]
    %v95 = vld [vmem:[#allocation5 + $0x10] sm:$0xf]
    %v96 = vld [vmem:[#allocation5 + $0x14] sm:$0xf]
    %v97 = vld [vmem:[#allocation5 + $0x18] sm:$0xf]
    %v98 = vld [vmem:[#allocation5 + $0x1c] sm:$0xf]
    %v99 = vld [vmem:[#allocation5 + $0x20] sm:$0xf]
    %v100 = vld [vmem:[#allocation5 + $0x24] sm:$0xf]
    %v101 = vld [vmem:[#allocation5 + $0x28] sm:$0xf]
    %v102 = vld [vmem:[#allocation5 + $0x2c] sm:$0xf]
    %v103 = vld [vmem:[#allocation5 + $0x30] sm:$0xf]
    %v104 = vld [vmem:[#allocation5 + $0x34] sm:$0xf]
    %v105 = vld [vmem:[#allocation5 + $0x38] sm:$0xf]
    %v106 = vld [vmem:[#allocation5 + $0x3c] sm:$0xf]
    %v109 = vunpack.c.l.b16 %v89
    %v110 = vunpack.c.l.b16 %v90
    %v111 = vpack.c.b16 %v110, %v109
    %v129 = vunpack.c.l.b16 %v91
    %v130 = vunpack.c.l.b16 %v92
    %v131 = vunpack.c.l.b16 %v93
    %v132 = vunpack.c.l.b16 %v94
    %v133 = vunpack.c.l.b16 %v95
    %v134 = vunpack.c.l.b16 %v96
    %v135 = vunpack.c.l.b16 %v97
    %v136 = vunpack.c.l.b16 %v98
    %v137 = vunpack.c.l.b16 %v99
    %v138 = vunpack.c.l.b16 %v100
    %v139 = vunpack.c.l.b16 %v101
    %v140 = vunpack.c.l.b16 %v102
    %v141 = vunpack.c.l.b16 %v103
    %v142 = vunpack.c.l.b16 %v104
    %v143 = vunpack.c.l.b16 %v105
    %v144 = vunpack.c.l.b16 %v106
    %v145 = vpack.c.b16 %v130, %v129
    %v146 = vpack.c.b16 %v132, %v131
    %v147 = vpack.c.b16 %v134, %v133
    %v148 = vpack.c.b16 %v136, %v135
    %v149 = vpack.c.b16 %v138, %v137
    %v150 = vpack.c.b16 %v140, %v139
    %v151 = vpack.c.b16 %v142, %v141
    %v152 = vpack.c.b16 %v144, %v143
    %161 = vmatprep.subr.bf16.mxu0 0
    %162 = vmatpush1.bf16.msra.mxu0 %v145
    %163 = vmatprep.subr.bf16.mxu0 0
    %164 = vmatpush1.bf16.msra.mxu0 %v146
    %165 = vmatprep.subr.bf16.mxu0 0
    %166 = vmatpush1.bf16.msra.mxu0 %v147
    %167 = vmatprep.subr.bf16.mxu0 0
    %168 = vmatpush1.bf16.msra.mxu0 %v148
    %169 = vmatprep.subr.bf16.mxu0 0
    %170 = vmatpush1.bf16.msra.mxu0 %v149
    %171 = vmatprep.subr.bf16.mxu0 0
    %172 = vmatpush1.bf16.msra.mxu0 %v150
    %173 = vmatprep.subr.bf16.mxu0 0
    %174 = vmatpush1.bf16.msra.mxu0 %v151
    %175 = vmatprep.subr.bf16.mxu0 0
    %176 = vmatpush1.bf16.msra.mxu0 %v152
    %177 = vmatprep.subr.bf16.mxu0 0
    %178 = vmatpush1.bf16.msra.mxu0 0
    %179 = vmatprep.subr.bf16.mxu0 0
    %180 = vmatpush1.bf16.msra.mxu0 0
    %181 = vmatprep.subr.bf16.mxu0 0
    %182 = vmatpush1.bf16.msra.mxu0 0
    %183 = vmatprep.subr.bf16.mxu0 0
    %184 = vmatpush1.bf16.msra.mxu0 0
    %185 = vmatprep.subr.bf16.mxu0 0
    %186 = vmatpush1.bf16.msra.mxu0 0
    %187 = vmatprep.subr.bf16.mxu0 0
    %188 = vmatpush1.bf16.msra.mxu0 0
    %189 = vmatprep.subr.bf16.mxu0 0
    %190 = vmatpush1.bf16.msra.mxu0 0
    %191 = vmatprep.subr.bf16.mxu0 0
    %192 = vmatpush1.bf16.msra.mxu0 0
    %193 = vmatprep.mubr.bf16.mxu0 0
    %194 = vmatmul.mubr.bf16.gmra.mrb[0].mxu0 %v111
    %v195 = vpop.f32.mrb[0].mxu0
    %v196 = vadd.f32 0.0, %v195
    %v197 = vpop.f32.mrb[0].mxu0
    %v198 = vpop.f32.mrb[0].mxu0
    %v199 = vadd.f32 0.0, %v198
    %v200 = vpop.f32.mrb[0].mxu0
    %201 = vdwg.mxu0
    %v202 = vld [vmem:[%s2] sm:$0x1]
    %v203 = vld [vmem:[%s3] sm:$0x1]
    %v204 = vadd.f32 %v196, %v199
    %v205 = vrot.slane %v204, 4
    %v206 = vadd.f32 %v204, %v205
    %v207 = vrot.slane %v206, 2
    %v208 = vadd.f32 %v206, %v207
    %v209 = vrot.slane %v208, 1
    %v210 = vadd.f32 %v208, %v209
    %v211 = vmul.f32 %v210, 0.0625
    %v212 = vmul.f32 %v196, %v196
    %v213 = vmul.f32 %v199, %v199
    %v214 = vadd.f32 %v212, %v213
    %v215 = vrot.slane %v214, 4
    %v216 = vadd.f32 %v214, %v215
    %v217 = vrot.slane %v216, 2
    %v218 = vadd.f32 %v216, %v217
    %v219 = vrot.slane %v218, 1
    %v220 = vadd.f32 %v218, %v219
    %v221 = vmul.f32 %v220, 0.0625
    %v222 = vmul.f32 %v211, %v211
    %v223 = vsub.f32 %v221, %v222
    %v224 = vmax.f32 %v223, 0.0
    %v225 = vadd.f32 %v224, 1e-05
    %v226 = vrsqrt.pop %v225
    %v227 = vmul.f32 %v202, %v226
    %v228 = vmul.f32 %v211, %v227
    %v229 = vsub.f32 %v203, %v228
    %v231 = vlaneseq
    %v232 = vshrl.u32 %v231, 7
    %v233 = vsub.s32 0, %v232
    %v234 = vrot.slane %v227, %v233
    %v236 = vmul.f32 %v196, %v234
    %v237 = vmul.f32 %v199, %v234
    %v239 = vlaneseq
    %v240 = vshrl.u32 %v239, 7
    %v241 = vsub.s32 0, %v240
    %v242 = vrot.slane %v229, %v241
    %v244 = vadd.f32 %v236, %v242
    %v245 = vadd.f32 %v237, %v242
    %v246 = vmax.f32 %v244, 0.0
    %v247 = vmax.f32 %v245, 0.0
    %v248 = vpack.c.bf16 %v247, %v246
    %v249 = vld [vmem:[#allocation7] sm:$0xf]
    %v250 = vld [vmem:[#allocation7 + $0x4] sm:$0xf]
    %v251 = vld [vmem:[#allocation7 + $0x8] sm:$0xf]
    %v252 = vld [vmem:[#allocation7 + $0xc] sm:$0xf]
    %v253 = vld [vmem:[#allocation7 + $0x10] sm:$0xf]
    %v254 = vld [vmem:[#allocation7 + $0x14] sm:$0xf]
    %v255 = vld [vmem:[#allocation7 + $0x18] sm:$0xf]
    %v256 = vld [vmem:[#allocation7 + $0x1c] sm:$0xf]
    %v257 = vld [vmem:[#allocation7 + $0x20] sm:$0xf]
    %v258 = vld [vmem:[#allocation7 + $0x24] sm:$0xf]
    %v259 = vld [vmem:[#allocation7 + $0x28] sm:$0xf]
    %v260 = vld [vmem:[#allocation7 + $0x2c] sm:$0xf]
    %v261 = vld [vmem:[#allocation7 + $0x30] sm:$0xf]
    %v262 = vld [vmem:[#allocation7 + $0x34] sm:$0xf]
    %v263 = vld [vmem:[#allocation7 + $0x38] sm:$0xf]
    %v264 = vld [vmem:[#allocation7 + $0x3c] sm:$0xf]
    %v281 = vunpack.c.l.b16 %v249
    %v282 = vunpack.c.l.b16 %v250
    %v283 = vunpack.c.l.b16 %v251
    %v284 = vunpack.c.l.b16 %v252
    %v285 = vunpack.c.l.b16 %v253
    %v286 = vunpack.c.l.b16 %v254
    %v287 = vunpack.c.l.b16 %v255
    %v288 = vunpack.c.l.b16 %v256
    %v289 = vunpack.c.l.b16 %v257
    %v290 = vunpack.c.l.b16 %v258
    %v291 = vunpack.c.l.b16 %v259
    %v292 = vunpack.c.l.b16 %v260
    %v293 = vunpack.c.l.b16 %v261
    %v294 = vunpack.c.l.b16 %v262
    %v295 = vunpack.c.l.b16 %v263
    %v296 = vunpack.c.l.b16 %v264
    %v297 = vpack.c.b16 %v282, %v281
    %v298 = vpack.c.b16 %v284, %v283
    %v299 = vpack.c.b16 %v286, %v285
    %v300 = vpack.c.b16 %v288, %v287
    %v301 = vpack.c.b16 %v290, %v289
    %v302 = vpack.c.b16 %v292, %v291
    %v303 = vpack.c.b16 %v294, %v293
    %v304 = vpack.c.b16 %v296, %v295
    %313 = vmatprep.subr.bf16.mxu0 0
    %314 = vmatpush1.bf16.msra.mxu0 %v297
    %315 = vmatprep.subr.bf16.mxu0 0
    %316 = vmatpush1.bf16.msra.mxu0 %v298
    %317 = vmatprep.subr.bf16.mxu0 0
    %318 = vmatpush1.bf16.msra.mxu0 %v299
    %319 = vmatprep.subr.bf16.mxu0 0
    %320 = vmatpush1.bf16.msra.mxu0 %v300
    %321 = vmatprep.subr.bf16.mxu0 0
    %322 = vmatpush1.bf16.msra.mxu0 %v301
    %323 = vmatprep.subr.bf16.mxu0 0
    %324 = vmatpush1.bf16.msra.mxu0 %v302
    %325 = vmatprep.subr.bf16.mxu0 0
    %326 = vmatpush1.bf16.msra.mxu0 %v303
    %327 = vmatprep.subr.bf16.mxu0 0
    %328 = vmatpush1.bf16.msra.mxu0 %v304
    %329 = vmatprep.subr.bf16.mxu0 0
    %330 = vmatpush1.bf16.msra.mxu0 0
    %331 = vmatprep.subr.bf16.mxu0 0
    %332 = vmatpush1.bf16.msra.mxu0 0
    %333 = vmatprep.subr.bf16.mxu0 0
    %334 = vmatpush1.bf16.msra.mxu0 0
    %335 = vmatprep.subr.bf16.mxu0 0
    %336 = vmatpush1.bf16.msra.mxu0 0
    %337 = vmatprep.subr.bf16.mxu0 0
    %338 = vmatpush1.bf16.msra.mxu0 0
    %339 = vmatprep.subr.bf16.mxu0 0
    %340 = vmatpush1.bf16.msra.mxu0 0
    %341 = vmatprep.subr.bf16.mxu0 0
    %342 = vmatpush1.bf16.msra.mxu0 0
    %343 = vmatprep.subr.bf16.mxu0 0
    %344 = vmatpush1.bf16.msra.mxu0 0
    %345 = vmatprep.mubr.bf16.mxu0 0
    %346 = vmatmul.mubr.bf16.gmra.mrb[0].mxu0 %v248
    %v347 = vpop.f32.mrb[0].mxu0
    %v348 = vadd.f32 0.0, %v347
    %v349 = vpop.f32.mrb[0].mxu0
    %v350 = vpop.f32.mrb[0].mxu0
    %v351 = vadd.f32 0.0, %v350
    %v352 = vpop.f32.mrb[0].mxu0
    %353 = vdwg.mxu0
    %v354 = vld [vmem:[%s5] sm:$0x1]
    %v355 = vld [vmem:[%s6] sm:$0x1]
    %v356 = vadd.f32 %v348, %v351
    %v357 = vrot.slane %v356, 4
    %v358 = vadd.f32 %v356, %v357
    %v359 = vrot.slane %v358, 2
    %v360 = vadd.f32 %v358, %v359
    %v361 = vrot.slane %v360, 1
    %v362 = vadd.f32 %v360, %v361
    %v363 = vmul.f32 %v362, 0.0625
    %v364 = vmul.f32 %v348, %v348
    %v365 = vmul.f32 %v351, %v351
    %v366 = vadd.f32 %v364, %v365
    %v367 = vrot.slane %v366, 4
    %v368 = vadd.f32 %v366, %v367
    %v369 = vrot.slane %v368, 2
    %v370 = vadd.f32 %v368, %v369
    %v371 = vrot.slane %v370, 1
    %v372 = vadd.f32 %v370, %v371
    %v373 = vmul.f32 %v372, 0.0625
    %v374 = vmul.f32 %v363, %v363
    %v375 = vsub.f32 %v373, %v374
    %v376 = vmax.f32 %v375, 0.0
    %v377 = vadd.f32 %v376, 1e-05
    %v378 = vrsqrt.pop %v377
    %v379 = vmul.f32 %v354, %v378
    %v380 = vmul.f32 %v363, %v379
    %v381 = vsub.f32 %v355, %v380
    %v383 = vlaneseq
    %v384 = vshrl.u32 %v383, 7
    %v385 = vsub.s32 0, %v384
    %v386 = vrot.slane %v379, %v385
    %v388 = vmul.f32 %v348, %v386
    %v389 = vmul.f32 %v351, %v386
    %v391 = vlaneseq
    %v392 = vshrl.u32 %v391, 7
    %v393 = vsub.s32 0, %v392
    %v394 = vrot.slane %v381, %v393
    %v396 = vadd.f32 %v388, %v394
    %v397 = vadd.f32 %v389, %v394
    %v398 = vmax.f32 %v396, 0.0
    %v399 = vmax.f32 %v397, 0.0
    %v400 = vpack.c.bf16 %v399, %v398
    %s401 = scalar_lea.vmem [#allocation7], 64
    %v402 = vld [vmem:[%s401] sm:$0xf]
    %v403 = vld [vmem:[%s401 + $0x4] sm:$0xf]
    %v404 = vld [vmem:[%s401 + $0x8] sm:$0xf]
    %v405 = vld [vmem:[%s401 + $0xc] sm:$0xf]
    %v406 = vld [vmem:[%s401 + $0x10] sm:$0xf]
    %v407 = vld [vmem:[%s401 + $0x14] sm:$0xf]
    %v408 = vld [vmem:[%s401 + $0x18] sm:$0xf]
    %v409 = vld [vmem:[%s401 + $0x1c] sm:$0xf]
    %v410 = vld [vmem:[%s401 + $0x20] sm:$0xf]
    %v411 = vld [vmem:[%s401 + $0x24] sm:$0xf]
    %v412 = vld [vmem:[%s401 + $0x28] sm:$0xf]
    %v413 = vld [vmem:[%s401 + $0x2c] sm:$0xf]
    %v414 = vld [vmem:[%s401 + $0x30] sm:$0xf]
    %v415 = vld [vmem:[%s401 + $0x34] sm:$0xf]
    %v416 = vld [vmem:[%s401 + $0x38] sm:$0xf]
    %v417 = vld [vmem:[%s401 + $0x3c] sm:$0xf]
    %v434 = vunpack.c.l.b16 %v402
    %v435 = vunpack.c.l.b16 %v403
    %v436 = vunpack.c.l.b16 %v404
    %v437 = vunpack.c.l.b16 %v405
    %v438 = vunpack.c.l.b16 %v406
    %v439 = vunpack.c.l.b16 %v407
    %v440 = vunpack.c.l.b16 %v408
    %v441 = vunpack.c.l.b16 %v409
    %v442 = vunpack.c.l.b16 %v410
    %v443 = vunpack.c.l.b16 %v411
    %v444 = vunpack.c.l.b16 %v412
    %v445 = vunpack.c.l.b16 %v413
    %v446 = vunpack.c.l.b16 %v414
    %v447 = vunpack.c.l.b16 %v415
    %v448 = vunpack.c.l.b16 %v416
    %v449 = vunpack.c.l.b16 %v417
    %v450 = vpack.c.b16 %v435, %v434
    %v451 = vpack.c.b16 %v437, %v436
    %v452 = vpack.c.b16 %v439, %v438
    %v453 = vpack.c.b16 %v441, %v440
    %v454 = vpack.c.b16 %v443, %v442
    %v455 = vpack.c.b16 %v445, %v444
    %v456 = vpack.c.b16 %v447, %v446
    %v457 = vpack.c.b16 %v449, %v448
    %466 = vmatprep.subr.bf16.mxu0 0
    %467 = vmatpush1.bf16.msra.mxu0 %v450
    %468 = vmatprep.subr.bf16.mxu0 0
    %469 = vmatpush1.bf16.msra.mxu0 %v451
    %470 = vmatprep.subr.bf16.mxu0 0
    %471 = vmatpush1.bf16.msra.mxu0 %v452
    %472 = vmatprep.subr.bf16.mxu0 0
    %473 = vmatpush1.bf16.msra.mxu0 %v453
    %474 = vmatprep.subr.bf16.mxu0 0
    %475 = vmatpush1.bf16.msra.mxu0 %v454
    %476 = vmatprep.subr.bf16.mxu0 0
    %477 = vmatpush1.bf16.msra.mxu0 %v455
    %478 = vmatprep.subr.bf16.mxu0 0
    %479 = vmatpush1.bf16.msra.mxu0 %v456
    %480 = vmatprep.subr.bf16.mxu0 0
    %481 = vmatpush1.bf16.msra.mxu0 %v457
    %482 = vmatprep.subr.bf16.mxu0 0
    %483 = vmatpush1.bf16.msra.mxu0 0
    %484 = vmatprep.subr.bf16.mxu0 0
    %485 = vmatpush1.bf16.msra.mxu0 0
    %486 = vmatprep.subr.bf16.mxu0 0
    %487 = vmatpush1.bf16.msra.mxu0 0
    %488 = vmatprep.subr.bf16.mxu0 0
    %489 = vmatpush1.bf16.msra.mxu0 0
    %490 = vmatprep.subr.bf16.mxu0 0
    %491 = vmatpush1.bf16.msra.mxu0 0
    %492 = vmatprep.subr.bf16.mxu0 0
    %493 = vmatpush1.bf16.msra.mxu0 0
    %494 = vmatprep.subr.bf16.mxu0 0
    %495 = vmatpush1.bf16.msra.mxu0 0
    %496 = vmatprep.subr.bf16.mxu0 0
    %497 = vmatpush1.bf16.msra.mxu0 0
    %498 = vmatprep.mubr.bf16.mxu0 0
    %499 = vmatmul.mubr.bf16.gmra.mrb[0].mxu0 %v400
    %v500 = vpop.f32.mrb[0].mxu0
    %v501 = vadd.f32 0.0, %v500
    %v502 = vpop.f32.mrb[0].mxu0
    %v503 = vpop.f32.mrb[0].mxu0
    %v504 = vadd.f32 0.0, %v503
    %v505 = vpop.f32.mrb[0].mxu0
    %506 = vdwg.mxu0
    %s507 = scalar_lea.vmem %s5, 1
    %v508 = vld [vmem:[%s507] sm:$0x1]
    %s509 = scalar_lea.vmem %s6, 1
    %v510 = vld [vmem:[%s509] sm:$0x1]
    %v511 = vadd.f32 %v501, %v504
    %v512 = vrot.slane %v511, 4
    %v513 = vadd.f32 %v511, %v512
    %v514 = vrot.slane %v513, 2
    %v515 = vadd.f32 %v513, %v514
    %v516 = vrot.slane %v515, 1
    %v517 = vadd.f32 %v515, %v516
    %v518 = vmul.f32 %v517, 0.0625
    %v519 = vmul.f32 %v501, %v501
    %v520 = vmul.f32 %v504, %v504
    %v521 = vadd.f32 %v519, %v520
    %v522 = vrot.slane %v521, 4
    %v523 = vadd.f32 %v521, %v522
    %v524 = vrot.slane %v523, 2
    %v525 = vadd.f32 %v523, %v524
    %v526 = vrot.slane %v525, 1
    %v527 = vadd.f32 %v525, %v526
    %v528 = vmul.f32 %v527, 0.0625
    %v529 = vmul.f32 %v518, %v518
    %v530 = vsub.f32 %v528, %v529
    %v531 = vmax.f32 %v530, 0.0
    %v532 = vadd.f32 %v531, 1e-05
    %v533 = vrsqrt.pop %v532
    %v534 = vmul.f32 %v508, %v533
    %v535 = vmul.f32 %v518, %v534
    %v536 = vsub.f32 %v510, %v535
    %v538 = vlaneseq
    %v539 = vshrl.u32 %v538, 7
    %v540 = vsub.s32 0, %v539
    %v541 = vrot.slane %v534, %v540
    %v543 = vmul.f32 %v501, %v541
    %v544 = vmul.f32 %v504, %v541
    %v546 = vlaneseq
    %v547 = vshrl.u32 %v546, 7
    %v548 = vsub.s32 0, %v547
    %v549 = vrot.slane %v536, %v548
    %v551 = vadd.f32 %v543, %v549
    %v552 = vadd.f32 %v544, %v549
    %v553 = vmax.f32 %v551, 0.0
    %v554 = vmax.f32 %v552, 0.0
    %v555 = vpack.c.bf16 %v554, %v553
    %v556 = vld [vmem:[#allocation8] sm:$0xf]
    %v557 = vld [vmem:[#allocation8 + $0x4] sm:$0xf]
    %v558 = vld [vmem:[#allocation8 + $0x8] sm:$0xf]
    %v559 = vld [vmem:[#allocation8 + $0xc] sm:$0xf]
    %v560 = vld [vmem:[#allocation8 + $0x10] sm:$0xf]
    %v561 = vld [vmem:[#allocation8 + $0x14] sm:$0xf]
    %v562 = vld [vmem:[#allocation8 + $0x18] sm:$0xf]
    %v563 = vld [vmem:[#allocation8 + $0x1c] sm:$0xf]
    %v564 = vld [vmem:[#allocation8 + $0x20] sm:$0xf]
    %v565 = vld [vmem:[#allocation8 + $0x24] sm:$0xf]
    %v566 = vld [vmem:[#allocation8 + $0x28] sm:$0xf]
    %v567 = vld [vmem:[#allocation8 + $0x2c] sm:$0xf]
    %v568 = vld [vmem:[#allocation8 + $0x30] sm:$0xf]
    %v569 = vld [vmem:[#allocation8 + $0x34] sm:$0xf]
    %v570 = vld [vmem:[#allocation8 + $0x38] sm:$0xf]
    %v571 = vld [vmem:[#allocation8 + $0x3c] sm:$0xf]
    %v572 = vld [vmem:[%s8] sm:$0x1]
    %v574 = vlaneseq
    %v575 = vshrl.u32 %v574, 7
    %v576 = vsub.s32 0, %v575
    %v577 = vrot.slane %v572, %v576
    %v595 = vunpack.c.l.b16 %v556
    %v596 = vunpack.c.l.b16 %v557
    %v597 = vunpack.c.l.b16 %v558
    %v598 = vunpack.c.l.b16 %v559
    %v599 = vunpack.c.l.b16 %v560
    %v600 = vunpack.c.l.b16 %v561
    %v601 = vunpack.c.l.b16 %v562
    %v602 = vunpack.c.l.b16 %v563
    %v603 = vunpack.c.l.b16 %v564
    %v604 = vunpack.c.l.b16 %v565
    %v605 = vunpack.c.l.b16 %v566
    %v606 = vunpack.c.l.b16 %v567
    %v607 = vunpack.c.l.b16 %v568
    %v608 = vunpack.c.l.b16 %v569
    %v609 = vunpack.c.l.b16 %v570
    %v610 = vunpack.c.l.b16 %v571
    %v611 = vpack.c.b16 %v596, %v595
    %v612 = vpack.c.b16 %v598, %v597
    %v613 = vpack.c.b16 %v600, %v599
    %v614 = vpack.c.b16 %v602, %v601
    %v615 = vpack.c.b16 %v604, %v603
    %v616 = vpack.c.b16 %v606, %v605
    %v617 = vpack.c.b16 %v608, %v607
    %v618 = vpack.c.b16 %v610, %v609
    %627 = vmatprep.subr.bf16.mxu0 0
    %628 = vmatpush1.bf16.msra.mxu0 %v611
    %629 = vmatprep.subr.bf16.mxu0 0
    %630 = vmatpush1.bf16.msra.mxu0 %v612
    %631 = vmatprep.subr.bf16.mxu0 0
    %632 = vmatpush1.bf16.msra.mxu0 %v613
    %633 = vmatprep.subr.bf16.mxu0 0
    %634 = vmatpush1.bf16.msra.mxu0 %v614
    %635 = vmatprep.subr.bf16.mxu0 0
    %636 = vmatpush1.bf16.msra.mxu0 %v615
    %637 = vmatprep.subr.bf16.mxu0 0
    %638 = vmatpush1.bf16.msra.mxu0 %v616
    %639 = vmatprep.subr.bf16.mxu0 0
    %640 = vmatpush1.bf16.msra.mxu0 %v617
    %641 = vmatprep.subr.bf16.mxu0 0
    %642 = vmatpush1.bf16.msra.mxu0 %v618
    %643 = vmatprep.subr.bf16.mxu0 0
    %644 = vmatpush1.bf16.msra.mxu0 0
    %645 = vmatprep.subr.bf16.mxu0 0
    %646 = vmatpush1.bf16.msra.mxu0 0
    %647 = vmatprep.subr.bf16.mxu0 0
    %648 = vmatpush1.bf16.msra.mxu0 0
    %649 = vmatprep.subr.bf16.mxu0 0
    %650 = vmatpush1.bf16.msra.mxu0 0
    %651 = vmatprep.subr.bf16.mxu0 0
    %652 = vmatpush1.bf16.msra.mxu0 0
    %653 = vmatprep.subr.bf16.mxu0 0
    %654 = vmatpush1.bf16.msra.mxu0 0
    %655 = vmatprep.subr.bf16.mxu0 0
    %656 = vmatpush1.bf16.msra.mxu0 0
    %657 = vmatprep.subr.bf16.mxu0 0
    %658 = vmatpush1.bf16.msra.mxu0 0
    %659 = vmatprep.mubr.bf16.mxu0 0
    %660 = vmatmul.mubr.bf16.gmra.mrb[0].mxu0 %v555
    %v661 = vpop.f32.mrb[0].mxu0
    %v662 = vadd.f32 %v577, %v661
    %v663 = vpop.f32.mrb[0].mxu0
    %v664 = vpop.f32.mrb[0].mxu0
    %v665 = vadd.f32 %v577, %v664
    %v666 = vpop.f32.mrb[0].mxu0
    %667 = vdwg.mxu0
    %668 = vst [vmem:[#allocation10] sm:$0xff] %v662
    %669 = vst [vmem:[#allocation10 + $0x8] sm:$0xff] %v665
    // Predicated region
    $region54: #{tpu_custom_call.1} parent=1 // pred_check
      _
    $region55: #{tpu_custom_call.1} parent=1 // pred_check_branch
      %671 = sbr.rel (0) target = $region57
    $region56: #{tpu_custom_call.1} parent=1 // pred_region
      %s673 = ssub.s32 256, 256
      %674 = vsyncadd [#allocation4], %s673
      %s675 = sshll.u32 [#allocation10], 4
      %s676 = int_to_ptr.vmem [resolvable:$true] %s675
      %681 = dma.vmem_to_hbm [thread:$0]  %s676, 256, %s9, [#allocation4], 128, 128, 8
    $region57: #{tpu_custom_call.1} parent=1 // pred_fallthru
      _
    // Predicated region
    $region58: #{tpu_custom_call.1} parent=1 // pred_check
      _
    $region59: #{tpu_custom_call.1} parent=1 // pred_check_branch
      %683 = sbr.rel (0) target = $region61
    $region60: #{tpu_custom_call.1} parent=1 // pred_region
      %684 = dma.done [#allocation4], 256
    $region61: #{tpu_custom_call.1} parent=1 // pred_fallthru
      _
    %685 = vsyncpa [#allocation3], 1
    %686 = vsyncpa [#allocation6], 1
    %687 = vsyncpa [#allocation9], 1
    %688 = vsyncpa [#allocation4], 1

</llo_original>
